<compile_context>
chip_gen: v7x
topology: tpu7x:2x2x1
jax: 0.10.0
libtpu: 0.0.40
codegen_flags: <defaults>
</compile_context>

<pallas_src>
import jax
import jax.numpy as jnp
from jax import lax
from jax.experimental import pallas as pl
from jax.experimental.pallas import tpu as pltpu


def _controller_loss_kernel(
    x0_ref,        # (num_op, 1)          VMEM f32   constant LSTM input, column form
    w_ih_ref,      # (num_op, 4*num_op)   VMEM f32   fused W_ih^T, gate order i,f,g,o
    w_hh_ref,      # (num_op, 4*num_op)   VMEM f32   fused W_hh^T, gate order i,f,g,o
    b_ref,         # (1, 4*num_op)        VMEM f32   b_ih + b_hh, gate order i,f,g,o
    action_ref,    # (num_batch*num_action,) SMEM int32   flattened action indices
    rewards_ref,   # (num_batch,)         SMEM f32
    loss_ref,      # (1,)                 SMEM f32   output scalar
):
    num_op = w_hh_ref.shape[0]
    four_p = w_hh_ref.shape[1]
    num_batch = rewards_ref.shape[0]
    num_action = action_ref.shape[0] // num_batch

    # Hoist weight load; constant across the whole serial unroll.
    w_hh = w_hh_ref[...]                                         # (P, 4P)

    # Constant-input gate contribution, computed once (VPU/XLU, no MXU).
    x_gates = (
        jnp.sum(x0_ref[...] * w_ih_ref[...], axis=0, keepdims=True) + b_ref[...]
    )                                                            # (1, 4P)

    # Gate pre-scale: 2.0 on the g-group so tanh(x) = 2*sigmoid(2x) - 1 folds the
    # tanh push into the single sigmoid push over the whole (1, 4P) row.
    lane4 = lax.broadcasted_iota(jnp.int32, (1, four_p), 1)
    gate_scale = jnp.where(
        (lane4 >= 2 * num_op) & (lane4 < 3 * num_op), 2.0, 1.0
    ).astype(jnp.float32)                                        # (1, 4P), hoisted

    # Identity mask for the cheap row -> column relayout of h (broadcast + mask +
    # lane-reduce instead of a transpose op).
    rid = lax.broadcasted_iota(jnp.int32, (num_op, num_op), 0)
    cid = lax.broadcasted_iota(jnp.int32, (num_op, num_op), 1)
    eye = (rid == cid).astype(jnp.float32)                       # (P, P), hoisted

    # --- LSTM unroll (PyTorch gate order: i, f, g, o), VPU-only recurrence ---
    h_col = jnp.zeros((num_op, 1), jnp.float32)                  # sublane-major state
    c = jnp.zeros((1, num_op), jnp.float32)
    hs = []
    for t in range(num_action):                                  # static unroll, tiny
        # matvec on VPU/XLU: lane-broadcast h_col over W_hh^T, sublane-reduce.
        pre = x_gates + jnp.sum(h_col * w_hh, axis=0, keepdims=True)   # (1, 4P)
        sg = jax.nn.sigmoid(pre * gate_scale)                    # ONE EUP push (i,f,g,o)
        i_g = sg[:, 0 * num_op:1 * num_op]
        f_g = sg[:, 1 * num_op:2 * num_op]
        g_g = 2.0 * sg[:, 2 * num_op:3 * num_op] - 1.0           # = tanh(pre_g)
        o_g = sg[:, 3 * num_op:4 * num_op]
        c = f_g * c + i_g * g_g
        h_row = o_g * jnp.tanh(c)                                # second EUP push
        hs.append(h_row)                                         # stays in vregs
        if t + 1 < num_action:
            # relayout (1,P) -> (P,1) for the next broadcast-multiply.
            h_col = jnp.sum(h_row * eye, axis=1, keepdims=True)

    outputs = jnp.concatenate(hs, axis=0)                        # (T, P)

    # --- softmax / log-softmax over the op dimension ---
    m = jnp.max(outputs, axis=-1, keepdims=True)
    e = jnp.exp(outputs - m)
    s = jnp.sum(e, axis=-1, keepdims=True)
    probs = e * pl.reciprocal(s, approx=True)                    # EUP slot, entropy only
    logp = (outputs - m) - jnp.log(s)                            # exact log

    entropy_sum = -jnp.sum(probs * logp)                         # same for every batch

    # --- REINFORCE term: reward-weighted one-hot mass w[t,p] = sum_b r_b*[p==a_bt] ---
    rowT = lax.broadcasted_iota(jnp.int32, (num_action, num_op), 0)
    colP = lax.broadcasted_iota(jnp.int32, (num_action, num_op), 1)
    w = jnp.zeros((num_action, num_op), jnp.float32)
    for b in range(num_batch):                                   # B*T scalar SMEM reads
        r = rewards_ref[b]
        for t in range(num_action):
            a = action_ref[b * num_action + t]
            w = w + jnp.where((rowT == t) & (colP == a), r, 0.0)
    policy_loss = -jnp.sum(logp * w)

    loss = policy_loss + entropy_sum * num_batch
    loss_ref[0] = loss / num_batch


def make_params(key, num_op):
    """Deterministic synthetic LSTM parameters (PyTorch-style uniform init)."""
    bound = 1.0 / (float(num_op) ** 0.5)
    k0, k1, k2, k3 = jax.random.split(key, 4)
    w_ih = jax.random.uniform(k0, (4 * num_op, num_op), jnp.float32, -bound, bound)
    w_hh = jax.random.uniform(k1, (4 * num_op, num_op), jnp.float32, -bound, bound)
    b_ih = jax.random.uniform(k2, (4 * num_op,), jnp.float32, -bound, bound)
    b_hh = jax.random.uniform(k3, (4 * num_op,), jnp.float32, -bound, bound)
    input0 = jnp.ones((1, num_op), jnp.float32) / num_op
    return dict(w_ih=w_ih, w_hh=w_hh, b_ih=b_ih, b_hh=b_hh, input0=input0)


def controller_sequence_loss(params, action, rewards, *, num_action):
    """Pallas implementation of Controller_sequence.forward(action, rewards)."""
    num_op = params["input0"].shape[1]
    num_batch = action.shape[0]

    # Glue: fused, pre-transposed weight slabs (gates i,f,g,o concatenated along the
    # lane axis) and column-form constant input so the kernel never needs the MXU.
    w_ih_cat = params["w_ih"].T                               # (num_op, 4*num_op)
    w_hh_cat = params["w_hh"].T                               # (num_op, 4*num_op)
    b_cat = (params["b_ih"] + params["b_hh"]).reshape(1, 4 * num_op)
    x0_col = params["input0"].reshape(num_op, 1)
    action_flat = action.astype(jnp.int32).reshape(num_batch * num_action)
    rewards1 = rewards.astype(jnp.float32).reshape(num_batch)

    loss = pl.pallas_call(
        _controller_loss_kernel,
        out_shape=jax.ShapeDtypeStruct((1,), jnp.float32),
        in_specs=[
            pl.BlockSpec(memory_space=pltpu.MemorySpace.VMEM),  # input0 (column)
            pl.BlockSpec(memory_space=pltpu.MemorySpace.VMEM),  # fused W_ih^T
            pl.BlockSpec(memory_space=pltpu.MemorySpace.VMEM),  # fused W_hh^T
            pl.BlockSpec(memory_space=pltpu.MemorySpace.VMEM),  # fused bias
            pl.BlockSpec(memory_space=pltpu.MemorySpace.SMEM),  # action indices (1-D)
            pl.BlockSpec(memory_space=pltpu.MemorySpace.SMEM),  # rewards (1-D)
        ],
        out_specs=pl.BlockSpec(memory_space=pltpu.MemorySpace.SMEM),
    )(x0_col, w_ih_cat, w_hh_cat, b_cat, action_flat, rewards1)
    return loss[0]


def controller_sequence_loss_ref(params, action, rewards, *, num_action):
    """Pure-JAX reference mirroring the PyTorch forward (in f32)."""
    num_op = params["input0"].shape[1]
    w_ih, w_hh = params["w_ih"], params["w_hh"]
    b = params["b_ih"] + params["b_hh"]
    x0 = params["input0"][0]
    h = jnp.zeros((num_op,), jnp.float32)
    c = jnp.zeros((num_op,), jnp.float32)
    x_g = w_ih @ x0 + b
    outs = []
    for _ in range(num_action):
        g = x_g + w_hh @ h
        i = jax.nn.sigmoid(g[0:num_op])
        f = jax.nn.sigmoid(g[num_op:2 * num_op])
        gg = jnp.tanh(g[2 * num_op:3 * num_op])
        o = jax.nn.sigmoid(g[3 * num_op:4 * num_op])
        c = f * c + i * gg
        h = o * jnp.tanh(c)
        outs.append(h)
    outputs = jnp.stack(outs)                       # (num_action, num_op)
    probs = jax.nn.softmax(outputs, axis=-1)
    logp = jax.nn.log_softmax(outputs, axis=-1)
    entropy_sum = -jnp.sum(probs * logp)
    loss = 0.0
    for bi in range(action.shape[0]):
        gathered = jnp.take_along_axis(logp, action[bi][:, None], axis=1)
        loss = loss + (-gathered * rewards[bi]).sum() + entropy_sum
    return loss / action.shape[0]


if __name__ == "__main__":
    # Small config implied by the module's __init__:
    num_feature = 4
    num_op_unary = 3
    num_op_binary = 4
    max_order = 2
    num_batch = 2
    num_op = num_op_unary + (num_feature - 1) * num_op_binary + 1   # 16
    num_action = num_feature * max_order                            # 8

    key = jax.random.PRNGKey(0)
    kp, ka, kr = jax.random.split(key, 3)
    params = make_params(kp, num_op)
    action = jax.random.randint(ka, (num_batch, num_action), 0, num_op, jnp.int32)
    rewards = jax.random.uniform(kr, (num_batch,), jnp.float32)

    loss = controller_sequence_loss(params, action, rewards, num_action=num_action)
    loss = jax.block_until_ready(loss)

    ref = controller_sequence_loss_ref(params, action, rewards, num_action=num_action)
    assert jnp.isfinite(loss), loss
    assert jnp.allclose(loss, ref, rtol=2e-2, atol=2e-2), (float(loss), float(ref))
    print("KERNEL_OK")
</pallas_src>

<mosaic_0001>
module attributes {stable_mosaic.version = 11 : i64} {
  func.func @_controller_loss_kernel(%arg0: memref<16x1xf32, #tpu.memory_space<vmem>>, %arg1: memref<16x64xf32, #tpu.memory_space<vmem>>, %arg2: memref<16x64xf32, #tpu.memory_space<vmem>>, %arg3: memref<1x64xf32, #tpu.memory_space<vmem>>, %arg4: memref<16xi32, #tpu.memory_space<smem>>, %arg5: memref<2xf32, #tpu.memory_space<smem>>, %arg6: memref<1xf32, #tpu.memory_space<smem>>) attributes {dimension_semantics = [], scalar_prefetch = 0 : i64, scratch_operands = 0 : i64, tpu.core_type = #tpu.core_type<tc>} {
    %c0 = arith.constant 0 : index
    %c0_0 = arith.constant 0 : index
    %0 = vector.load %arg2[%c0, %c0_0] : memref<16x64xf32, #tpu.memory_space<vmem>>, vector<16x64xf32>
    %c0_1 = arith.constant 0 : index
    %c0_2 = arith.constant 0 : index
    %1 = vector.load %arg0[%c0_1, %c0_2] : memref<16x1xf32, #tpu.memory_space<vmem>>, vector<16x1xf32>
    %c0_3 = arith.constant 0 : index
    %c0_4 = arith.constant 0 : index
    %2 = vector.load %arg1[%c0_3, %c0_4] : memref<16x64xf32, #tpu.memory_space<vmem>>, vector<16x64xf32>
    %3 = vector.broadcast %1 : vector<16x1xf32> to vector<16x64xf32>
    %4 = arith.mulf %3, %2 : vector<16x64xf32>
    %cst = arith.constant dense<0.000000e+00> : vector<64xf32>
    %5 = vector.multi_reduction <add>, %4, %cst [0] : vector<16x64xf32> to vector<64xf32>
    %6 = vector.shape_cast %5 : vector<64xf32> to vector<1x64xf32>
    %c0_5 = arith.constant 0 : index
    %c0_6 = arith.constant 0 : index
    %7 = vector.load %arg3[%c0_5, %c0_6] : memref<1x64xf32, #tpu.memory_space<vmem>>, vector<1x64xf32>
    %8 = arith.addf %6, %7 : vector<1x64xf32>
    %9 = tpu.iota {dimensions = array<i32: 1>} : vector<1x64xi32>
    %c32_i32 = arith.constant 32 : i32
    %10 = vector.broadcast %c32_i32 : i32 to vector<1x64xi32>
    %11 = arith.cmpi sge, %9, %10 : vector<1x64xi32>
    %c48_i32 = arith.constant 48 : i32
    %12 = vector.broadcast %c48_i32 : i32 to vector<1x64xi32>
    %13 = arith.cmpi slt, %9, %12 : vector<1x64xi32>
    %14 = arith.andi %11, %13 : vector<1x64xi1>
    %cst_7 = arith.constant 2.000000e+00 : f32
    %cst_8 = arith.constant 1.000000e+00 : f32
    %15 = vector.broadcast %cst_7 : f32 to vector<1x64xf32>
    %16 = vector.broadcast %cst_8 : f32 to vector<1x64xf32>
    %17 = arith.select %14, %15, %16 : vector<1x64xi1>, vector<1x64xf32>
    %18 = tpu.iota {dimensions = array<i32: 0>} : vector<16x16xi32>
    %19 = tpu.iota {dimensions = array<i32: 1>} : vector<16x16xi32>
    %20 = arith.cmpi eq, %18, %19 : vector<16x16xi32>
    %21 = arith.extui %20 : vector<16x16xi1> to vector<16x16xi32>
    %22 = arith.sitofp %21 : vector<16x16xi32> to vector<16x16xf32>
    %cst_9 = arith.constant 0.000000e+00 : f32
    %23 = vector.broadcast %cst_9 : f32 to vector<16x1xf32>
    %cst_10 = arith.constant 0.000000e+00 : f32
    %24 = vector.broadcast %cst_10 : f32 to vector<1x16xf32>
    %25 = vector.broadcast %23 : vector<16x1xf32> to vector<16x64xf32>
    %26 = arith.mulf %25, %0 : vector<16x64xf32>
    %cst_11 = arith.constant dense<0.000000e+00> : vector<64xf32>
    %27 = vector.multi_reduction <add>, %26, %cst_11 [0] : vector<16x64xf32> to vector<64xf32>
    %28 = vector.shape_cast %27 : vector<64xf32> to vector<1x64xf32>
    %29 = arith.addf %8, %28 : vector<1x64xf32>
    %30 = arith.mulf %29, %17 : vector<1x64xf32>
    %31 = arith.negf %30 : vector<1x64xf32>
    %32 = math.exp %31 : vector<1x64xf32>
    %cst_12 = arith.constant 1.000000e+00 : f32
    %33 = vector.broadcast %cst_12 : f32 to vector<1x64xf32>
    %34 = arith.addf %33, %32 : vector<1x64xf32>
    %35 = arith.divf %33, %34 : vector<1x64xf32>
    %36 = vector.extract_strided_slice %35 {offsets = [0, 0], sizes = [1, 16], strides = [1, 1]} : vector<1x64xf32> to vector<1x16xf32>
    %37 = vector.extract_strided_slice %35 {offsets = [0, 16], sizes = [1, 16], strides = [1, 1]} : vector<1x64xf32> to vector<1x16xf32>
    %38 = vector.extract_strided_slice %35 {offsets = [0, 32], sizes = [1, 16], strides = [1, 1]} : vector<1x64xf32> to vector<1x16xf32>
    %cst_13 = arith.constant 2.000000e+00 : f32
    %39 = vector.broadcast %cst_13 : f32 to vector<1x16xf32>
    %40 = arith.mulf %39, %38 : vector<1x16xf32>
    %cst_14 = arith.constant 1.000000e+00 : f32
    %41 = vector.broadcast %cst_14 : f32 to vector<1x16xf32>
    %42 = arith.subf %40, %41 : vector<1x16xf32>
    %43 = vector.extract_strided_slice %35 {offsets = [0, 48], sizes = [1, 16], strides = [1, 1]} : vector<1x64xf32> to vector<1x16xf32>
    %44 = arith.mulf %37, %24 : vector<1x16xf32>
    %45 = arith.mulf %36, %42 : vector<1x16xf32>
    %46 = arith.addf %44, %45 : vector<1x16xf32>
    %47 = math.tanh %46 : vector<1x16xf32>
    %48 = arith.mulf %43, %47 : vector<1x16xf32>
    %49 = vector.broadcast %48 : vector<1x16xf32> to vector<16x16xf32>
    %50 = arith.mulf %49, %22 : vector<16x16xf32>
    %cst_15 = arith.constant dense<0.000000e+00> : vector<16xf32>
    %51 = vector.multi_reduction <add>, %50, %cst_15 [1] : vector<16x16xf32> to vector<16xf32>
    %52 = vector.shape_cast %51 : vector<16xf32> to vector<16x1xf32>
    %53 = vector.broadcast %52 : vector<16x1xf32> to vector<16x64xf32>
    %54 = arith.mulf %53, %0 : vector<16x64xf32>
    %cst_16 = arith.constant dense<0.000000e+00> : vector<64xf32>
    %55 = vector.multi_reduction <add>, %54, %cst_16 [0] : vector<16x64xf32> to vector<64xf32>
    %56 = vector.shape_cast %55 : vector<64xf32> to vector<1x64xf32>
    %57 = arith.addf %8, %56 : vector<1x64xf32>
    %58 = arith.mulf %57, %17 : vector<1x64xf32>
    %59 = arith.negf %58 : vector<1x64xf32>
    %60 = math.exp %59 : vector<1x64xf32>
    %cst_17 = arith.constant 1.000000e+00 : f32
    %61 = vector.broadcast %cst_17 : f32 to vector<1x64xf32>
    %62 = arith.addf %61, %60 : vector<1x64xf32>
    %63 = arith.divf %61, %62 : vector<1x64xf32>
    %64 = vector.extract_strided_slice %63 {offsets = [0, 0], sizes = [1, 16], strides = [1, 1]} : vector<1x64xf32> to vector<1x16xf32>
    %65 = vector.extract_strided_slice %63 {offsets = [0, 16], sizes = [1, 16], strides = [1, 1]} : vector<1x64xf32> to vector<1x16xf32>
    %66 = vector.extract_strided_slice %63 {offsets = [0, 32], sizes = [1, 16], strides = [1, 1]} : vector<1x64xf32> to vector<1x16xf32>
    %cst_18 = arith.constant 2.000000e+00 : f32
    %67 = vector.broadcast %cst_18 : f32 to vector<1x16xf32>
    %68 = arith.mulf %67, %66 : vector<1x16xf32>
    %cst_19 = arith.constant 1.000000e+00 : f32
    %69 = vector.broadcast %cst_19 : f32 to vector<1x16xf32>
    %70 = arith.subf %68, %69 : vector<1x16xf32>
    %71 = vector.extract_strided_slice %63 {offsets = [0, 48], sizes = [1, 16], strides = [1, 1]} : vector<1x64xf32> to vector<1x16xf32>
    %72 = arith.mulf %65, %46 : vector<1x16xf32>
    %73 = arith.mulf %64, %70 : vector<1x16xf32>
    %74 = arith.addf %72, %73 : vector<1x16xf32>
    %75 = math.tanh %74 : vector<1x16xf32>
    %76 = arith.mulf %71, %75 : vector<1x16xf32>
    %77 = vector.broadcast %76 : vector<1x16xf32> to vector<16x16xf32>
    %78 = arith.mulf %77, %22 : vector<16x16xf32>
    %cst_20 = arith.constant dense<0.000000e+00> : vector<16xf32>
    %79 = vector.multi_reduction <add>, %78, %cst_20 [1] : vector<16x16xf32> to vector<16xf32>
    %80 = vector.shape_cast %79 : vector<16xf32> to vector<16x1xf32>
    %81 = vector.broadcast %80 : vector<16x1xf32> to vector<16x64xf32>
    %82 = arith.mulf %81, %0 : vector<16x64xf32>
    %cst_21 = arith.constant dense<0.000000e+00> : vector<64xf32>
    %83 = vector.multi_reduction <add>, %82, %cst_21 [0] : vector<16x64xf32> to vector<64xf32>
    %84 = vector.shape_cast %83 : vector<64xf32> to vector<1x64xf32>
    %85 = arith.addf %8, %84 : vector<1x64xf32>
    %86 = arith.mulf %85, %17 : vector<1x64xf32>
    %87 = arith.negf %86 : vector<1x64xf32>
    %88 = math.exp %87 : vector<1x64xf32>
    %cst_22 = arith.constant 1.000000e+00 : f32
    %89 = vector.broadcast %cst_22 : f32 to vector<1x64xf32>
    %90 = arith.addf %89, %88 : vector<1x64xf32>
    %91 = arith.divf %89, %90 : vector<1x64xf32>
    %92 = vector.extract_strided_slice %91 {offsets = [0, 0], sizes = [1, 16], strides = [1, 1]} : vector<1x64xf32> to vector<1x16xf32>
    %93 = vector.extract_strided_slice %91 {offsets = [0, 16], sizes = [1, 16], strides = [1, 1]} : vector<1x64xf32> to vector<1x16xf32>
    %94 = vector.extract_strided_slice %91 {offsets = [0, 32], sizes = [1, 16], strides = [1, 1]} : vector<1x64xf32> to vector<1x16xf32>
    %cst_23 = arith.constant 2.000000e+00 : f32
    %95 = vector.broadcast %cst_23 : f32 to vector<1x16xf32>
    %96 = arith.mulf %95, %94 : vector<1x16xf32>
    %cst_24 = arith.constant 1.000000e+00 : f32
    %97 = vector.broadcast %cst_24 : f32 to vector<1x16xf32>
    %98 = arith.subf %96, %97 : vector<1x16xf32>
    %99 = vector.extract_strided_slice %91 {offsets = [0, 48], sizes = [1, 16], strides = [1, 1]} : vector<1x64xf32> to vector<1x16xf32>
    %100 = arith.mulf %93, %74 : vector<1x16xf32>
    %101 = arith.mulf %92, %98 : vector<1x16xf32>
    %102 = arith.addf %100, %101 : vector<1x16xf32>
    %103 = math.tanh %102 : vector<1x16xf32>
    %104 = arith.mulf %99, %103 : vector<1x16xf32>
    %105 = vector.broadcast %104 : vector<1x16xf32> to vector<16x16xf32>
    %106 = arith.mulf %105, %22 : vector<16x16xf32>
    %cst_25 = arith.constant dense<0.000000e+00> : vector<16xf32>
    %107 = vector.multi_reduction <add>, %106, %cst_25 [1] : vector<16x16xf32> to vector<16xf32>
    %108 = vector.shape_cast %107 : vector<16xf32> to vector<16x1xf32>
    %109 = vector.broadcast %108 : vector<16x1xf32> to vector<16x64xf32>
    %110 = arith.mulf %109, %0 : vector<16x64xf32>
    %cst_26 = arith.constant dense<0.000000e+00> : vector<64xf32>
    %111 = vector.multi_reduction <add>, %110, %cst_26 [0] : vector<16x64xf32> to vector<64xf32>
    %112 = vector.shape_cast %111 : vector<64xf32> to vector<1x64xf32>
    %113 = arith.addf %8, %112 : vector<1x64xf32>
    %114 = arith.mulf %113, %17 : vector<1x64xf32>
    %115 = arith.negf %114 : vector<1x64xf32>
    %116 = math.exp %115 : vector<1x64xf32>
    %cst_27 = arith.constant 1.000000e+00 : f32
    %117 = vector.broadcast %cst_27 : f32 to vector<1x64xf32>
    %118 = arith.addf %117, %116 : vector<1x64xf32>
    %119 = arith.divf %117, %118 : vector<1x64xf32>
    %120 = vector.extract_strided_slice %119 {offsets = [0, 0], sizes = [1, 16], strides = [1, 1]} : vector<1x64xf32> to vector<1x16xf32>
    %121 = vector.extract_strided_slice %119 {offsets = [0, 16], sizes = [1, 16], strides = [1, 1]} : vector<1x64xf32> to vector<1x16xf32>
    %122 = vector.extract_strided_slice %119 {offsets = [0, 32], sizes = [1, 16], strides = [1, 1]} : vector<1x64xf32> to vector<1x16xf32>
    %cst_28 = arith.constant 2.000000e+00 : f32
    %123 = vector.broadcast %cst_28 : f32 to vector<1x16xf32>
    %124 = arith.mulf %123, %122 : vector<1x16xf32>
    %cst_29 = arith.constant 1.000000e+00 : f32
    %125 = vector.broadcast %cst_29 : f32 to vector<1x16xf32>
    %126 = arith.subf %124, %125 : vector<1x16xf32>
    %127 = vector.extract_strided_slice %119 {offsets = [0, 48], sizes = [1, 16], strides = [1, 1]} : vector<1x64xf32> to vector<1x16xf32>
    %128 = arith.mulf %121, %102 : vector<1x16xf32>
    %129 = arith.mulf %120, %126 : vector<1x16xf32>
    %130 = arith.addf %128, %129 : vector<1x16xf32>
    %131 = math.tanh %130 : vector<1x16xf32>
    %132 = arith.mulf %127, %131 : vector<1x16xf32>
    %133 = vector.broadcast %132 : vector<1x16xf32> to vector<16x16xf32>
    %134 = arith.mulf %133, %22 : vector<16x16xf32>
    %cst_30 = arith.constant dense<0.000000e+00> : vector<16xf32>
    %135 = vector.multi_reduction <add>, %134, %cst_30 [1] : vector<16x16xf32> to vector<16xf32>
    %136 = vector.shape_cast %135 : vector<16xf32> to vector<16x1xf32>
    %137 = vector.broadcast %136 : vector<16x1xf32> to vector<16x64xf32>
    %138 = arith.mulf %137, %0 : vector<16x64xf32>
    %cst_31 = arith.constant dense<0.000000e+00> : vector<64xf32>
    %139 = vector.multi_reduction <add>, %138, %cst_31 [0] : vector<16x64xf32> to vector<64xf32>
    %140 = vector.shape_cast %139 : vector<64xf32> to vector<1x64xf32>
    %141 = arith.addf %8, %140 : vector<1x64xf32>
    %142 = arith.mulf %141, %17 : vector<1x64xf32>
    %143 = arith.negf %142 : vector<1x64xf32>
    %144 = math.exp %143 : vector<1x64xf32>
    %cst_32 = arith.constant 1.000000e+00 : f32
    %145 = vector.broadcast %cst_32 : f32 to vector<1x64xf32>
    %146 = arith.addf %145, %144 : vector<1x64xf32>
    %147 = arith.divf %145, %146 : vector<1x64xf32>
    %148 = vector.extract_strided_slice %147 {offsets = [0, 0], sizes = [1, 16], strides = [1, 1]} : vector<1x64xf32> to vector<1x16xf32>
    %149 = vector.extract_strided_slice %147 {offsets = [0, 16], sizes = [1, 16], strides = [1, 1]} : vector<1x64xf32> to vector<1x16xf32>
    %150 = vector.extract_strided_slice %147 {offsets = [0, 32], sizes = [1, 16], strides = [1, 1]} : vector<1x64xf32> to vector<1x16xf32>
    %cst_33 = arith.constant 2.000000e+00 : f32
    %151 = vector.broadcast %cst_33 : f32 to vector<1x16xf32>
    %152 = arith.mulf %151, %150 : vector<1x16xf32>
    %cst_34 = arith.constant 1.000000e+00 : f32
    %153 = vector.broadcast %cst_34 : f32 to vector<1x16xf32>
    %154 = arith.subf %152, %153 : vector<1x16xf32>
    %155 = vector.extract_strided_slice %147 {offsets = [0, 48], sizes = [1, 16], strides = [1, 1]} : vector<1x64xf32> to vector<1x16xf32>
    %156 = arith.mulf %149, %130 : vector<1x16xf32>
    %157 = arith.mulf %148, %154 : vector<1x16xf32>
    %158 = arith.addf %156, %157 : vector<1x16xf32>
    %159 = math.tanh %158 : vector<1x16xf32>
    %160 = arith.mulf %155, %159 : vector<1x16xf32>
    %161 = vector.broadcast %160 : vector<1x16xf32> to vector<16x16xf32>
    %162 = arith.mulf %161, %22 : vector<16x16xf32>
    %cst_35 = arith.constant dense<0.000000e+00> : vector<16xf32>
    %163 = vector.multi_reduction <add>, %162, %cst_35 [1] : vector<16x16xf32> to vector<16xf32>
    %164 = vector.shape_cast %163 : vector<16xf32> to vector<16x1xf32>
    %165 = vector.broadcast %164 : vector<16x1xf32> to vector<16x64xf32>
    %166 = arith.mulf %165, %0 : vector<16x64xf32>
    %cst_36 = arith.constant dense<0.000000e+00> : vector<64xf32>
    %167 = vector.multi_reduction <add>, %166, %cst_36 [0] : vector<16x64xf32> to vector<64xf32>
    %168 = vector.shape_cast %167 : vector<64xf32> to vector<1x64xf32>
    %169 = arith.addf %8, %168 : vector<1x64xf32>
    %170 = arith.mulf %169, %17 : vector<1x64xf32>
    %171 = arith.negf %170 : vector<1x64xf32>
    %172 = math.exp %171 : vector<1x64xf32>
    %cst_37 = arith.constant 1.000000e+00 : f32
    %173 = vector.broadcast %cst_37 : f32 to vector<1x64xf32>
    %174 = arith.addf %173, %172 : vector<1x64xf32>
    %175 = arith.divf %173, %174 : vector<1x64xf32>
    %176 = vector.extract_strided_slice %175 {offsets = [0, 0], sizes = [1, 16], strides = [1, 1]} : vector<1x64xf32> to vector<1x16xf32>
    %177 = vector.extract_strided_slice %175 {offsets = [0, 16], sizes = [1, 16], strides = [1, 1]} : vector<1x64xf32> to vector<1x16xf32>
    %178 = vector.extract_strided_slice %175 {offsets = [0, 32], sizes = [1, 16], strides = [1, 1]} : vector<1x64xf32> to vector<1x16xf32>
    %cst_38 = arith.constant 2.000000e+00 : f32
    %179 = vector.broadcast %cst_38 : f32 to vector<1x16xf32>
    %180 = arith.mulf %179, %178 : vector<1x16xf32>
    %cst_39 = arith.constant 1.000000e+00 : f32
    %181 = vector.broadcast %cst_39 : f32 to vector<1x16xf32>
    %182 = arith.subf %180, %181 : vector<1x16xf32>
    %183 = vector.extract_strided_slice %175 {offsets = [0, 48], sizes = [1, 16], strides = [1, 1]} : vector<1x64xf32> to vector<1x16xf32>
    %184 = arith.mulf %177, %158 : vector<1x16xf32>
    %185 = arith.mulf %176, %182 : vector<1x16xf32>
    %186 = arith.addf %184, %185 : vector<1x16xf32>
    %187 = math.tanh %186 : vector<1x16xf32>
    %188 = arith.mulf %183, %187 : vector<1x16xf32>
    %189 = vector.broadcast %188 : vector<1x16xf32> to vector<16x16xf32>
    %190 = arith.mulf %189, %22 : vector<16x16xf32>
    %cst_40 = arith.constant dense<0.000000e+00> : vector<16xf32>
    %191 = vector.multi_reduction <add>, %190, %cst_40 [1] : vector<16x16xf32> to vector<16xf32>
    %192 = vector.shape_cast %191 : vector<16xf32> to vector<16x1xf32>
    %193 = vector.broadcast %192 : vector<16x1xf32> to vector<16x64xf32>
    %194 = arith.mulf %193, %0 : vector<16x64xf32>
    %cst_41 = arith.constant dense<0.000000e+00> : vector<64xf32>
    %195 = vector.multi_reduction <add>, %194, %cst_41 [0] : vector<16x64xf32> to vector<64xf32>
    %196 = vector.shape_cast %195 : vector<64xf32> to vector<1x64xf32>
    %197 = arith.addf %8, %196 : vector<1x64xf32>
    %198 = arith.mulf %197, %17 : vector<1x64xf32>
    %199 = arith.negf %198 : vector<1x64xf32>
    %200 = math.exp %199 : vector<1x64xf32>
    %cst_42 = arith.constant 1.000000e+00 : f32
    %201 = vector.broadcast %cst_42 : f32 to vector<1x64xf32>
    %202 = arith.addf %201, %200 : vector<1x64xf32>
    %203 = arith.divf %201, %202 : vector<1x64xf32>
    %204 = vector.extract_strided_slice %203 {offsets = [0, 0], sizes = [1, 16], strides = [1, 1]} : vector<1x64xf32> to vector<1x16xf32>
    %205 = vector.extract_strided_slice %203 {offsets = [0, 16], sizes = [1, 16], strides = [1, 1]} : vector<1x64xf32> to vector<1x16xf32>
    %206 = vector.extract_strided_slice %203 {offsets = [0, 32], sizes = [1, 16], strides = [1, 1]} : vector<1x64xf32> to vector<1x16xf32>
    %cst_43 = arith.constant 2.000000e+00 : f32
    %207 = vector.broadcast %cst_43 : f32 to vector<1x16xf32>
    %208 = arith.mulf %207, %206 : vector<1x16xf32>
    %cst_44 = arith.constant 1.000000e+00 : f32
    %209 = vector.broadcast %cst_44 : f32 to vector<1x16xf32>
    %210 = arith.subf %208, %209 : vector<1x16xf32>
    %211 = vector.extract_strided_slice %203 {offsets = [0, 48], sizes = [1, 16], strides = [1, 1]} : vector<1x64xf32> to vector<1x16xf32>
    %212 = arith.mulf %205, %186 : vector<1x16xf32>
    %213 = arith.mulf %204, %210 : vector<1x16xf32>
    %214 = arith.addf %212, %213 : vector<1x16xf32>
    %215 = math.tanh %214 : vector<1x16xf32>
    %216 = arith.mulf %211, %215 : vector<1x16xf32>
    %217 = vector.broadcast %216 : vector<1x16xf32> to vector<16x16xf32>
    %218 = arith.mulf %217, %22 : vector<16x16xf32>
    %cst_45 = arith.constant dense<0.000000e+00> : vector<16xf32>
    %219 = vector.multi_reduction <add>, %218, %cst_45 [1] : vector<16x16xf32> to vector<16xf32>
    %220 = vector.shape_cast %219 : vector<16xf32> to vector<16x1xf32>
    %221 = vector.broadcast %220 : vector<16x1xf32> to vector<16x64xf32>
    %222 = arith.mulf %221, %0 : vector<16x64xf32>
    %cst_46 = arith.constant dense<0.000000e+00> : vector<64xf32>
    %223 = vector.multi_reduction <add>, %222, %cst_46 [0] : vector<16x64xf32> to vector<64xf32>
    %224 = vector.shape_cast %223 : vector<64xf32> to vector<1x64xf32>
    %225 = arith.addf %8, %224 : vector<1x64xf32>
    %226 = arith.mulf %225, %17 : vector<1x64xf32>
    %227 = arith.negf %226 : vector<1x64xf32>
    %228 = math.exp %227 : vector<1x64xf32>
    %cst_47 = arith.constant 1.000000e+00 : f32
    %229 = vector.broadcast %cst_47 : f32 to vector<1x64xf32>
    %230 = arith.addf %229, %228 : vector<1x64xf32>
    %231 = arith.divf %229, %230 : vector<1x64xf32>
    %232 = vector.extract_strided_slice %231 {offsets = [0, 0], sizes = [1, 16], strides = [1, 1]} : vector<1x64xf32> to vector<1x16xf32>
    %233 = vector.extract_strided_slice %231 {offsets = [0, 16], sizes = [1, 16], strides = [1, 1]} : vector<1x64xf32> to vector<1x16xf32>
    %234 = vector.extract_strided_slice %231 {offsets = [0, 32], sizes = [1, 16], strides = [1, 1]} : vector<1x64xf32> to vector<1x16xf32>
    %cst_48 = arith.constant 2.000000e+00 : f32
    %235 = vector.broadcast %cst_48 : f32 to vector<1x16xf32>
    %236 = arith.mulf %235, %234 : vector<1x16xf32>
    %cst_49 = arith.constant 1.000000e+00 : f32
    %237 = vector.broadcast %cst_49 : f32 to vector<1x16xf32>
    %238 = arith.subf %236, %237 : vector<1x16xf32>
    %239 = vector.extract_strided_slice %231 {offsets = [0, 48], sizes = [1, 16], strides = [1, 1]} : vector<1x64xf32> to vector<1x16xf32>
    %240 = arith.mulf %233, %214 : vector<1x16xf32>
    %241 = arith.mulf %232, %238 : vector<1x16xf32>
    %242 = arith.addf %240, %241 : vector<1x16xf32>
    %243 = math.tanh %242 : vector<1x16xf32>
    %244 = arith.mulf %239, %243 : vector<1x16xf32>
    %245 = tpu.concatenate %48, %76, %104, %132, %160, %188, %216, %244 in 0 : vector<1x16xf32>, vector<1x16xf32>, vector<1x16xf32>, vector<1x16xf32>, vector<1x16xf32>, vector<1x16xf32>, vector<1x16xf32>, vector<1x16xf32> -> vector<8x16xf32>
    %cst_50 = arith.constant dense<0xFF800000> : vector<8xf32>
    %246 = vector.multi_reduction <maximumf>, %245, %cst_50 [1] : vector<8x16xf32> to vector<8xf32>
    %247 = vector.shape_cast %246 : vector<8xf32> to vector<8x1xf32>
    %248 = vector.broadcast %247 : vector<8x1xf32> to vector<8x16xf32>
    %249 = arith.subf %245, %248 : vector<8x16xf32>
    %250 = math.exp %249 : vector<8x16xf32>
    %cst_51 = arith.constant dense<0.000000e+00> : vector<8xf32>
    %251 = vector.multi_reduction <add>, %250, %cst_51 [1] : vector<8x16xf32> to vector<8xf32>
    %252 = vector.shape_cast %251 : vector<8xf32> to vector<8x1xf32>
    %253 = tpu.reciprocal %252 {approx = true} : vector<8x1xf32> -> vector<8x1xf32>
    %254 = vector.broadcast %253 : vector<8x1xf32> to vector<8x16xf32>
    %255 = arith.mulf %250, %254 : vector<8x16xf32>
    %256 = vector.broadcast %247 : vector<8x1xf32> to vector<8x16xf32>
    %257 = arith.subf %245, %256 : vector<8x16xf32>
    %258 = math.log %252 : vector<8x1xf32>
    %259 = vector.broadcast %258 : vector<8x1xf32> to vector<8x16xf32>
    %260 = arith.subf %257, %259 : vector<8x16xf32>
    %261 = arith.mulf %255, %260 : vector<8x16xf32>
    %262 = vector.shape_cast %261 : vector<8x16xf32> to vector<1x8x16xf32>
    %cst_52 = arith.constant dense<0.000000e+00> : vector<1xf32>
    %263 = vector.multi_reduction <add>, %262, %cst_52 [1, 2] : vector<1x8x16xf32> to vector<1xf32>
    %264 = vector.shape_cast %263 : vector<1xf32> to vector<1x1x1xf32>
    %265 = vector.extract %264[0, 0, 0] : f32 from vector<1x1x1xf32>
    %cst_53 = arith.constant 0.000000e+00 : f32
    %266 = arith.subf %cst_53, %265 : f32
    %267 = tpu.iota {dimensions = array<i32: 0>} : vector<8x16xi32>
    %268 = tpu.iota {dimensions = array<i32: 1>} : vector<8x16xi32>
    %cst_54 = arith.constant 0.000000e+00 : f32
    %269 = vector.broadcast %cst_54 : f32 to vector<8x16xf32>
    %c0_55 = arith.constant 0 : index
    %270 = memref.load %arg5[%c0_55] : memref<2xf32, #tpu.memory_space<smem>>
    %c0_56 = arith.constant 0 : index
    %271 = memref.load %arg4[%c0_56] : memref<16xi32, #tpu.memory_space<smem>>
    %c0_i32 = arith.constant 0 : i32
    %272 = vector.broadcast %c0_i32 : i32 to vector<8x16xi32>
    %273 = arith.cmpi eq, %267, %272 : vector<8x16xi32>
    %274 = vector.broadcast %271 : i32 to vector<8x16xi32>
    %275 = arith.cmpi eq, %268, %274 : vector<8x16xi32>
    %276 = arith.andi %273, %275 : vector<8x16xi1>
    %cst_57 = arith.constant 0.000000e+00 : f32
    %277 = vector.broadcast %270 : f32 to vector<8x16xf32>
    %278 = vector.broadcast %cst_57 : f32 to vector<8x16xf32>
    %279 = arith.select %276, %277, %278 : vector<8x16xi1>, vector<8x16xf32>
    %280 = arith.addf %269, %279 : vector<8x16xf32>
    %c1 = arith.constant 1 : index
    %281 = memref.load %arg4[%c1] : memref<16xi32, #tpu.memory_space<smem>>
    %c1_i32 = arith.constant 1 : i32
    %282 = vector.broadcast %c1_i32 : i32 to vector<8x16xi32>
    %283 = arith.cmpi eq, %267, %282 : vector<8x16xi32>
    %284 = vector.broadcast %281 : i32 to vector<8x16xi32>
    %285 = arith.cmpi eq, %268, %284 : vector<8x16xi32>
    %286 = arith.andi %283, %285 : vector<8x16xi1>
    %cst_58 = arith.constant 0.000000e+00 : f32
    %287 = vector.broadcast %270 : f32 to vector<8x16xf32>
    %288 = vector.broadcast %cst_58 : f32 to vector<8x16xf32>
    %289 = arith.select %286, %287, %288 : vector<8x16xi1>, vector<8x16xf32>
    %290 = arith.addf %280, %289 : vector<8x16xf32>
    %c2 = arith.constant 2 : index
    %291 = memref.load %arg4[%c2] : memref<16xi32, #tpu.memory_space<smem>>
    %c2_i32 = arith.constant 2 : i32
    %292 = vector.broadcast %c2_i32 : i32 to vector<8x16xi32>
    %293 = arith.cmpi eq, %267, %292 : vector<8x16xi32>
    %294 = vector.broadcast %291 : i32 to vector<8x16xi32>
    %295 = arith.cmpi eq, %268, %294 : vector<8x16xi32>
    %296 = arith.andi %293, %295 : vector<8x16xi1>
    %cst_59 = arith.constant 0.000000e+00 : f32
    %297 = vector.broadcast %270 : f32 to vector<8x16xf32>
    %298 = vector.broadcast %cst_59 : f32 to vector<8x16xf32>
    %299 = arith.select %296, %297, %298 : vector<8x16xi1>, vector<8x16xf32>
    %300 = arith.addf %290, %299 : vector<8x16xf32>
    %c3 = arith.constant 3 : index
    %301 = memref.load %arg4[%c3] : memref<16xi32, #tpu.memory_space<smem>>
    %c3_i32 = arith.constant 3 : i32
    %302 = vector.broadcast %c3_i32 : i32 to vector<8x16xi32>
    %303 = arith.cmpi eq, %267, %302 : vector<8x16xi32>
    %304 = vector.broadcast %301 : i32 to vector<8x16xi32>
    %305 = arith.cmpi eq, %268, %304 : vector<8x16xi32>
    %306 = arith.andi %303, %305 : vector<8x16xi1>
    %cst_60 = arith.constant 0.000000e+00 : f32
    %307 = vector.broadcast %270 : f32 to vector<8x16xf32>
    %308 = vector.broadcast %cst_60 : f32 to vector<8x16xf32>
    %309 = arith.select %306, %307, %308 : vector<8x16xi1>, vector<8x16xf32>
    %310 = arith.addf %300, %309 : vector<8x16xf32>
    %c4 = arith.constant 4 : index
    %311 = memref.load %arg4[%c4] : memref<16xi32, #tpu.memory_space<smem>>
    %c4_i32 = arith.constant 4 : i32
    %312 = vector.broadcast %c4_i32 : i32 to vector<8x16xi32>
    %313 = arith.cmpi eq, %267, %312 : vector<8x16xi32>
    %314 = vector.broadcast %311 : i32 to vector<8x16xi32>
    %315 = arith.cmpi eq, %268, %314 : vector<8x16xi32>
    %316 = arith.andi %313, %315 : vector<8x16xi1>
    %cst_61 = arith.constant 0.000000e+00 : f32
    %317 = vector.broadcast %270 : f32 to vector<8x16xf32>
    %318 = vector.broadcast %cst_61 : f32 to vector<8x16xf32>
    %319 = arith.select %316, %317, %318 : vector<8x16xi1>, vector<8x16xf32>
    %320 = arith.addf %310, %319 : vector<8x16xf32>
    %c5 = arith.constant 5 : index
    %321 = memref.load %arg4[%c5] : memref<16xi32, #tpu.memory_space<smem>>
    %c5_i32 = arith.constant 5 : i32
    %322 = vector.broadcast %c5_i32 : i32 to vector<8x16xi32>
    %323 = arith.cmpi eq, %267, %322 : vector<8x16xi32>
    %324 = vector.broadcast %321 : i32 to vector<8x16xi32>
    %325 = arith.cmpi eq, %268, %324 : vector<8x16xi32>
    %326 = arith.andi %323, %325 : vector<8x16xi1>
    %cst_62 = arith.constant 0.000000e+00 : f32
    %327 = vector.broadcast %270 : f32 to vector<8x16xf32>
    %328 = vector.broadcast %cst_62 : f32 to vector<8x16xf32>
    %329 = arith.select %326, %327, %328 : vector<8x16xi1>, vector<8x16xf32>
    %330 = arith.addf %320, %329 : vector<8x16xf32>
    %c6 = arith.constant 6 : index
    %331 = memref.load %arg4[%c6] : memref<16xi32, #tpu.memory_space<smem>>
    %c6_i32 = arith.constant 6 : i32
    %332 = vector.broadcast %c6_i32 : i32 to vector<8x16xi32>
    %333 = arith.cmpi eq, %267, %332 : vector<8x16xi32>
    %334 = vector.broadcast %331 : i32 to vector<8x16xi32>
    %335 = arith.cmpi eq, %268, %334 : vector<8x16xi32>
    %336 = arith.andi %333, %335 : vector<8x16xi1>
    %cst_63 = arith.constant 0.000000e+00 : f32
    %337 = vector.broadcast %270 : f32 to vector<8x16xf32>
    %338 = vector.broadcast %cst_63 : f32 to vector<8x16xf32>
    %339 = arith.select %336, %337, %338 : vector<8x16xi1>, vector<8x16xf32>
    %340 = arith.addf %330, %339 : vector<8x16xf32>
    %c7 = arith.constant 7 : index
    %341 = memref.load %arg4[%c7] : memref<16xi32, #tpu.memory_space<smem>>
    %c7_i32 = arith.constant 7 : i32
    %342 = vector.broadcast %c7_i32 : i32 to vector<8x16xi32>
    %343 = arith.cmpi eq, %267, %342 : vector<8x16xi32>
    %344 = vector.broadcast %341 : i32 to vector<8x16xi32>
    %345 = arith.cmpi eq, %268, %344 : vector<8x16xi32>
    %346 = arith.andi %343, %345 : vector<8x16xi1>
    %cst_64 = arith.constant 0.000000e+00 : f32
    %347 = vector.broadcast %270 : f32 to vector<8x16xf32>
    %348 = vector.broadcast %cst_64 : f32 to vector<8x16xf32>
    %349 = arith.select %346, %347, %348 : vector<8x16xi1>, vector<8x16xf32>
    %350 = arith.addf %340, %349 : vector<8x16xf32>
    %c1_65 = arith.constant 1 : index
    %351 = memref.load %arg5[%c1_65] : memref<2xf32, #tpu.memory_space<smem>>
    %c8 = arith.constant 8 : index
    %352 = memref.load %arg4[%c8] : memref<16xi32, #tpu.memory_space<smem>>
    %c0_i32_66 = arith.constant 0 : i32
    %353 = vector.broadcast %c0_i32_66 : i32 to vector<8x16xi32>
    %354 = arith.cmpi eq, %267, %353 : vector<8x16xi32>
    %355 = vector.broadcast %352 : i32 to vector<8x16xi32>
    %356 = arith.cmpi eq, %268, %355 : vector<8x16xi32>
    %357 = arith.andi %354, %356 : vector<8x16xi1>
    %cst_67 = arith.constant 0.000000e+00 : f32
    %358 = vector.broadcast %351 : f32 to vector<8x16xf32>
    %359 = vector.broadcast %cst_67 : f32 to vector<8x16xf32>
    %360 = arith.select %357, %358, %359 : vector<8x16xi1>, vector<8x16xf32>
    %361 = arith.addf %350, %360 : vector<8x16xf32>
    %c9 = arith.constant 9 : index
    %362 = memref.load %arg4[%c9] : memref<16xi32, #tpu.memory_space<smem>>
    %c1_i32_68 = arith.constant 1 : i32
    %363 = vector.broadcast %c1_i32_68 : i32 to vector<8x16xi32>
    %364 = arith.cmpi eq, %267, %363 : vector<8x16xi32>
    %365 = vector.broadcast %362 : i32 to vector<8x16xi32>
    %366 = arith.cmpi eq, %268, %365 : vector<8x16xi32>
    %367 = arith.andi %364, %366 : vector<8x16xi1>
    %cst_69 = arith.constant 0.000000e+00 : f32
    %368 = vector.broadcast %351 : f32 to vector<8x16xf32>
    %369 = vector.broadcast %cst_69 : f32 to vector<8x16xf32>
    %370 = arith.select %367, %368, %369 : vector<8x16xi1>, vector<8x16xf32>
    %371 = arith.addf %361, %370 : vector<8x16xf32>
    %c10 = arith.constant 10 : index
    %372 = memref.load %arg4[%c10] : memref<16xi32, #tpu.memory_space<smem>>
    %c2_i32_70 = arith.constant 2 : i32
    %373 = vector.broadcast %c2_i32_70 : i32 to vector<8x16xi32>
    %374 = arith.cmpi eq, %267, %373 : vector<8x16xi32>
    %375 = vector.broadcast %372 : i32 to vector<8x16xi32>
    %376 = arith.cmpi eq, %268, %375 : vector<8x16xi32>
    %377 = arith.andi %374, %376 : vector<8x16xi1>
    %cst_71 = arith.constant 0.000000e+00 : f32
    %378 = vector.broadcast %351 : f32 to vector<8x16xf32>
    %379 = vector.broadcast %cst_71 : f32 to vector<8x16xf32>
    %380 = arith.select %377, %378, %379 : vector<8x16xi1>, vector<8x16xf32>
    %381 = arith.addf %371, %380 : vector<8x16xf32>
    %c11 = arith.constant 11 : index
    %382 = memref.load %arg4[%c11] : memref<16xi32, #tpu.memory_space<smem>>
    %c3_i32_72 = arith.constant 3 : i32
    %383 = vector.broadcast %c3_i32_72 : i32 to vector<8x16xi32>
    %384 = arith.cmpi eq, %267, %383 : vector<8x16xi32>
    %385 = vector.broadcast %382 : i32 to vector<8x16xi32>
    %386 = arith.cmpi eq, %268, %385 : vector<8x16xi32>
    %387 = arith.andi %384, %386 : vector<8x16xi1>
    %cst_73 = arith.constant 0.000000e+00 : f32
    %388 = vector.broadcast %351 : f32 to vector<8x16xf32>
    %389 = vector.broadcast %cst_73 : f32 to vector<8x16xf32>
    %390 = arith.select %387, %388, %389 : vector<8x16xi1>, vector<8x16xf32>
    %391 = arith.addf %381, %390 : vector<8x16xf32>
    %c12 = arith.constant 12 : index
    %392 = memref.load %arg4[%c12] : memref<16xi32, #tpu.memory_space<smem>>
    %c4_i32_74 = arith.constant 4 : i32
    %393 = vector.broadcast %c4_i32_74 : i32 to vector<8x16xi32>
    %394 = arith.cmpi eq, %267, %393 : vector<8x16xi32>
    %395 = vector.broadcast %392 : i32 to vector<8x16xi32>
    %396 = arith.cmpi eq, %268, %395 : vector<8x16xi32>
    %397 = arith.andi %394, %396 : vector<8x16xi1>
    %cst_75 = arith.constant 0.000000e+00 : f32
    %398 = vector.broadcast %351 : f32 to vector<8x16xf32>
    %399 = vector.broadcast %cst_75 : f32 to vector<8x16xf32>
    %400 = arith.select %397, %398, %399 : vector<8x16xi1>, vector<8x16xf32>
    %401 = arith.addf %391, %400 : vector<8x16xf32>
    %c13 = arith.constant 13 : index
    %402 = memref.load %arg4[%c13] : memref<16xi32, #tpu.memory_space<smem>>
    %c5_i32_76 = arith.constant 5 : i32
    %403 = vector.broadcast %c5_i32_76 : i32 to vector<8x16xi32>
    %404 = arith.cmpi eq, %267, %403 : vector<8x16xi32>
    %405 = vector.broadcast %402 : i32 to vector<8x16xi32>
    %406 = arith.cmpi eq, %268, %405 : vector<8x16xi32>
    %407 = arith.andi %404, %406 : vector<8x16xi1>
    %cst_77 = arith.constant 0.000000e+00 : f32
    %408 = vector.broadcast %351 : f32 to vector<8x16xf32>
    %409 = vector.broadcast %cst_77 : f32 to vector<8x16xf32>
    %410 = arith.select %407, %408, %409 : vector<8x16xi1>, vector<8x16xf32>
    %411 = arith.addf %401, %410 : vector<8x16xf32>
    %c14 = arith.constant 14 : index
    %412 = memref.load %arg4[%c14] : memref<16xi32, #tpu.memory_space<smem>>
    %c6_i32_78 = arith.constant 6 : i32
    %413 = vector.broadcast %c6_i32_78 : i32 to vector<8x16xi32>
    %414 = arith.cmpi eq, %267, %413 : vector<8x16xi32>
    %415 = vector.broadcast %412 : i32 to vector<8x16xi32>
    %416 = arith.cmpi eq, %268, %415 : vector<8x16xi32>
    %417 = arith.andi %414, %416 : vector<8x16xi1>
    %cst_79 = arith.constant 0.000000e+00 : f32
    %418 = vector.broadcast %351 : f32 to vector<8x16xf32>
    %419 = vector.broadcast %cst_79 : f32 to vector<8x16xf32>
    %420 = arith.select %417, %418, %419 : vector<8x16xi1>, vector<8x16xf32>
    %421 = arith.addf %411, %420 : vector<8x16xf32>
    %c15 = arith.constant 15 : index
    %422 = memref.load %arg4[%c15] : memref<16xi32, #tpu.memory_space<smem>>
    %c7_i32_80 = arith.constant 7 : i32
    %423 = vector.broadcast %c7_i32_80 : i32 to vector<8x16xi32>
    %424 = arith.cmpi eq, %267, %423 : vector<8x16xi32>
    %425 = vector.broadcast %422 : i32 to vector<8x16xi32>
    %426 = arith.cmpi eq, %268, %425 : vector<8x16xi32>
    %427 = arith.andi %424, %426 : vector<8x16xi1>
    %cst_81 = arith.constant 0.000000e+00 : f32
    %428 = vector.broadcast %351 : f32 to vector<8x16xf32>
    %429 = vector.broadcast %cst_81 : f32 to vector<8x16xf32>
    %430 = arith.select %427, %428, %429 : vector<8x16xi1>, vector<8x16xf32>
    %431 = arith.addf %421, %430 : vector<8x16xf32>
    %432 = arith.mulf %260, %431 : vector<8x16xf32>
    %433 = vector.shape_cast %432 : vector<8x16xf32> to vector<1x8x16xf32>
    %cst_82 = arith.constant dense<0.000000e+00> : vector<1xf32>
    %434 = vector.multi_reduction <add>, %433, %cst_82 [1, 2] : vector<1x8x16xf32> to vector<1xf32>
    %435 = vector.shape_cast %434 : vector<1xf32> to vector<1x1x1xf32>
    %436 = vector.extract %435[0, 0, 0] : f32 from vector<1x1x1xf32>
    %cst_83 = arith.constant 0.000000e+00 : f32
    %437 = arith.subf %cst_83, %436 : f32
    %cst_84 = arith.constant 2.000000e+00 : f32
    %438 = arith.mulf %266, %cst_84 : f32
    %439 = arith.addf %437, %438 : f32
    %cst_85 = arith.constant 2.000000e+00 : f32
    %440 = arith.divf %439, %cst_85 : f32
    %c0_86 = arith.constant 0 : index
    %441 = memref.load %arg6[%c0_86] : memref<1xf32, #tpu.memory_space<smem>>
    memref.store %440, %arg6[%c0_86] : memref<1xf32, #tpu.memory_space<smem>>
    return
  }
}

</mosaic_0001>

<llo_original>
// kernel: tpu_custom_call.1
$region0: #{tpu_custom_call.1}
  #allocation0 [shape = 'u32[]', space=smem, size = 0x4, offset = 0x4, fixed_abs, tag = 'smem constant byte address 0x4 - core index']
  #allocation1 [shape = 'u32[144,128]{1,0:T(1,128)}', space=vmem, size = 0x12000, scoped, tag = 'internal scratch']
  %s0 = inlined_call_operand.vmem [shape: f32[16,1], index: 0, kind: input, shape index: {}]
  %s1 = inlined_call_operand.vmem [shape: f32[16,64], index: 1, kind: input, shape index: {}]
  %s2 = inlined_call_operand.hbm [shape: f32[16,64], index: 2, kind: input, shape index: {}]
  %s3 = inlined_call_operand.vmem [shape: f32[1,64], index: 3, kind: input, shape index: {}]
  %s4 = inlined_call_operand.vmem [shape: s32[16], index: 4, kind: input, shape index: {}]
  %s5 = inlined_call_operand.vmem [shape: f32[2], index: 5, kind: input, shape index: {}]
  %s6 = inlined_call_operand.hbm [shape: f32[1], index: 6, kind: output, shape index: {}]
  %s7 = sld [smem:[#allocation0]]
  $region46: #{tpu_custom_call.1} parent=0
    _
  %s9 = ssub.s32 1, %s7
  %s10 = scalar_select 0, %s9, %s7
  $region1: #{tpu_custom_call.1} parent=0
    #allocation2 [shape = 'u8[8192]{0}', space=vmem, size = 0x2000, scoped, tag = 'input window, operand 2, single buffered']
    #allocation3 [shape = 's32[1]{0}', space=sflag, size = 0x4, scoped, tag = 'scoped memory for tpu_custom_call.1']
    #allocation4 [shape = 's32[1]{0}', space=sflag, size = 0x4, scoped, tag = 'scoped memory for tpu_custom_call.1']
    #allocation5 [shape = 's32[1]{0}', space=sflag, size = 0x4, scoped, tag = 'scoped memory for tpu_custom_call.1']
    #allocation6 [shape = 'u8[512]{0}', space=smem, size = 0x200, scoped, tag = 'input window, operand 4, single buffered']
    #allocation7 [shape = 'u8[512]{0}', space=smem, size = 0x200, scoped, tag = 'input window, operand 5, single buffered']
    #allocation8 [shape = 's32[1]{0}', space=sflag, size = 0x4, scoped, tag = 'scoped memory for tpu_custom_call.1']
    #allocation9 [shape = 'u8[512]{0}', space=smem, size = 0x200, scoped, tag = 'output window, operand 0, single buffered']
    %11 = vsyncpa [#allocation3], 0
    %12 = vsyncpa [#allocation5], 0
    %13 = vsyncpa [#allocation8], 0
    %14 = vsyncpa [#allocation4], 0
    // Predicated region
    $region2: #{tpu_custom_call.1} parent=1 // pred_check
      _
    $region3: #{tpu_custom_call.1} parent=1 // pred_check_branch
      %16 = sbr.rel (0) target = $region5
    $region4: #{tpu_custom_call.1} parent=1 // pred_region
      _
    $region5: #{tpu_custom_call.1} parent=1 // pred_fallthru
      _
    // Predicated region
    $region6: #{tpu_custom_call.1} parent=1 // pred_check
      _
    $region7: #{tpu_custom_call.1} parent=1 // pred_check_branch
      %18 = sbr.rel (0) target = $region9
    $region8: #{tpu_custom_call.1} parent=1 // pred_region
      _
    $region9: #{tpu_custom_call.1} parent=1 // pred_fallthru
      _
    // Predicated region
    $region10: #{tpu_custom_call.1} parent=1 // pred_check
      _
    $region11: #{tpu_custom_call.1} parent=1 // pred_check_branch
      %20 = sbr.rel (0) target = $region13
    $region12: #{tpu_custom_call.1} parent=1 // pred_region
      %s22 = ssub.s32 256, 256
      %23 = vsyncadd [#allocation3], %s22
      %s24 = sshll.u32 [#allocation2], 4
      %s25 = int_to_ptr.vmem [resolvable:$true] %s24
      %30 = dma.hbm_to_vmem [thread:$0]  %s2, 256, %s25, [#allocation3], 128, 128, 8
    $region13: #{tpu_custom_call.1} parent=1 // pred_fallthru
      _
    // Predicated region
    $region14: #{tpu_custom_call.1} parent=1 // pred_check
      _
    $region15: #{tpu_custom_call.1} parent=1 // pred_check_branch
      %32 = sbr.rel (0) target = $region17
    $region16: #{tpu_custom_call.1} parent=1 // pred_region
      _
    $region17: #{tpu_custom_call.1} parent=1 // pred_fallthru
      _
    // Predicated region
    $region18: #{tpu_custom_call.1} parent=1 // pred_check
      _
    $region19: #{tpu_custom_call.1} parent=1 // pred_check_branch
      %34 = sbr.rel (0) target = $region21
    $region20: #{tpu_custom_call.1} parent=1 // pred_region
      %s36 = ssub.s32 16, 16
      %37 = vsyncadd [#allocation5], %s36
      %s39 = sshll.u32 %s4, 4
      %s40 = int_to_ptr.vmem [resolvable:$true] %s39
      %42 = dma.vmem_to_smem %s40, 16, [#allocation6], [#allocation5]
    $region21: #{tpu_custom_call.1} parent=1 // pred_fallthru
      _
    // Predicated region
    $region22: #{tpu_custom_call.1} parent=1 // pred_check
      _
    $region23: #{tpu_custom_call.1} parent=1 // pred_check_branch
      %44 = sbr.rel (0) target = $region25
    $region24: #{tpu_custom_call.1} parent=1 // pred_region
      %s46 = ssub.s32 16, 16
      %47 = vsyncadd [#allocation8], %s46
      %s49 = sshll.u32 %s5, 4
      %s50 = int_to_ptr.vmem [resolvable:$true] %s49
      %52 = dma.vmem_to_smem %s50, 16, [#allocation7], [#allocation8]
    $region25: #{tpu_custom_call.1} parent=1 // pred_fallthru
      _
    // Predicated region
    $region26: #{tpu_custom_call.1} parent=1 // pred_check
      _
    $region27: #{tpu_custom_call.1} parent=1 // pred_check_branch
      %54 = sbr.rel (0) target = $region29
    $region28: #{tpu_custom_call.1} parent=1 // pred_region
      %55 = dma.done [#allocation3], 256
    $region29: #{tpu_custom_call.1} parent=1 // pred_fallthru
      _
    // Predicated region
    $region30: #{tpu_custom_call.1} parent=1 // pred_check
      _
    $region31: #{tpu_custom_call.1} parent=1 // pred_check_branch
      %57 = sbr.rel (0) target = $region33
    $region32: #{tpu_custom_call.1} parent=1 // pred_region
      %58 = dma.done [#allocation5], 16
    $region33: #{tpu_custom_call.1} parent=1 // pred_fallthru
      _
    // Predicated region
    $region34: #{tpu_custom_call.1} parent=1 // pred_check
      _
    $region35: #{tpu_custom_call.1} parent=1 // pred_check_branch
      %60 = sbr.rel (0) target = $region37
    $region36: #{tpu_custom_call.1} parent=1 // pred_region
      %61 = dma.done [#allocation8], 16
    $region37: #{tpu_custom_call.1} parent=1 // pred_fallthru
      _
    %62 = sfence
    %v63 = vld [vmem:[#allocation2] sm:$0xff]
    %v64 = vld [vmem:[#allocation2 + $0x8] sm:$0xff]
    %v65 = vld [vmem:[%s0] sm:$0xff]
    %v66 = vld [vmem:[%s0 + $0x8] sm:$0xff]
    %v67 = vld [vmem:[%s1] sm:$0xff]
    %v68 = vld [vmem:[%s1 + $0x8] sm:$0xff]
    %70 = vset.pattern.permute.xlu0 0
    %71 = vperm.xlu0 %70, %v65
    %v72 = vpop.permute.xlu0 %71
    %75 = vset.pattern.permute.xlu0 0
    %76 = vperm.xlu0 %75, %v66
    %v77 = vpop.permute.xlu0 %76
    %v79 = vmul.f32 %v72, %v67
    %v80 = vmul.f32 %v77, %v68
    %vm81 = vcmask 523264
    %v82 = vsel %vm81, %v79, 0.0
    %v83 = vsel %vm81, %v80, 0.0
    %v84 = vadd.f32 %v82, %v83
    %v85 = vrot.slane %v84, 4
    %v86 = vadd.f32 %v84, %v85
    %v87 = vrot.slane %v86, 2
    %v88 = vadd.f32 %v86, %v87
    %v89 = vrot.slane %v88, 1
    %v90 = vadd.f32 %v88, %v89
    %v91 = vld [vmem:[%s3] sm:$0x1]
    %v92 = vadd.f32 %v90, %v91
    %v93 = vlaneseq
    %v94 = vand.u32 %v93, 127
    %vm95 = vcmp.ge.s32.totalorder %v94, 32
    %vm96 = vcmp.lt.s32.totalorder %v94, 48
    %vm97 = vmand %vm95, %vm96
    %v98 = vsel %vm97, 2.0, 1.0
    %v99 = vlaneseq
    %v100 = vshrl.u32 %v99, 7
    %v101 = vadd.s32 %v100, 8
    %vm102 = vcmp.eq.s32.totalorder %v100, %v94
    %vm103 = vcmp.eq.s32.totalorder %v101, %v94
    %v104 = vsel %vm102, 1, 0
    %v105 = vsel %vm103, 1, 0
    %v106 = vcvt.s32.f32 %v104
    %v107 = vcvt.s32.f32 %v105
    %v108 = vmul.f32 %v63, 0.0
    %v109 = vmul.f32 %v64, 0.0
    %v110 = vsel %vm81, %v108, 0.0
    %v111 = vsel %vm81, %v109, 0.0
    %v112 = vadd.f32 %v110, %v111
    %v113 = vrot.slane %v112, 4
    %v114 = vadd.f32 %v112, %v113
    %v115 = vrot.slane %v114, 2
    %v116 = vadd.f32 %v114, %v115
    %v117 = vrot.slane %v116, 1
    %v118 = vadd.f32 %v116, %v117
    %v119 = vadd.f32 %v92, %v118
    %v120 = vmul.f32 %v119, %v98
    %v121 = vxor.u32 %v120, 2147483648
    %v122 = vmul.f32 %v121, 1.442695
    %v123 = vpow.pop %v122
    %v124 = vadd.f32 %v123, 1.0
    %v125 = vrcp.pop %v124
    %v126 = vmul.f32 1.0, %v125
    %v127 = vmul.f32 %v126, 2.0
    %v128 = vsub.f32 %v127, 1.0
    %v129 = vmul.f32 %v126, 0.0
    %131 = vrot.lane.b32.xlu0 %v128, 96
    %v132 = vpop.permute.xlu0 %131
    %v134 = vmul.f32 %v126, %v132
    %136 = vrot.lane.b32.xlu0 %v134, 16
    %v137 = vpop.permute.xlu0 %136
    %v139 = vadd.f32 %v129, %v137
    %v140 = vtanh.pop %v139
    %142 = vrot.lane.b32.xlu0 %v140, 32
    %v143 = vpop.permute.xlu0 %142
    %v145 = vmul.f32 %v126, %v143
    %v146 = vlaneseq
    %v147 = vshrl.u32 %v146, 7
    %v148 = vsub.s32 0, %v147
    %v149 = vrot.slane %v145, %v148
    %152 = vrot.lane.b32.xlu0 %v106, 48
    %v153 = vpop.permute.xlu0 %152
    %154 = vrot.lane.b32.xlu0 %v107, 48
    %v155 = vpop.permute.xlu0 %154
    %v158 = vmul.f32 %v149, %v153
    %v159 = vmul.f32 %v149, %v155
    %162 = vrot.lane.b32.xlu0 %v158, 80
    %v163 = vpop.permute.xlu0 %162
    %164 = vrot.lane.b32.xlu0 %v159, 80
    %v165 = vpop.permute.xlu0 %164
    %vm168 = vcmask 130048
    %v169 = vsel %vm168, %v163, 0.0
    %170 = vadd.xlane.f32.xlu0 %v169
    %v171 = vpop.xlane.xlu0 %170
    %v172 = vsel %vm168, %v165, 0.0
    %173 = vadd.xlane.f32.xlu0 %v172
    %v174 = vpop.xlane.xlu0 %173
    %v175 = vmul.f32 %v171, %v63
    %v176 = vmul.f32 %v174, %v64
    %v177 = vsel %vm81, %v175, 0.0
    %v178 = vsel %vm81, %v176, 0.0
    %v179 = vadd.f32 %v177, %v178
    %v180 = vrot.slane %v179, 4
    %v181 = vadd.f32 %v179, %v180
    %v182 = vrot.slane %v181, 2
    %v183 = vadd.f32 %v181, %v182
    %v184 = vrot.slane %v183, 1
    %v185 = vadd.f32 %v183, %v184
    %v186 = vadd.f32 %v92, %v185
    %v187 = vmul.f32 %v186, %v98
    %v188 = vxor.u32 %v187, 2147483648
    %v189 = vmul.f32 %v188, 1.442695
    %v190 = vpow.pop %v189
    %v191 = vadd.f32 %v190, 1.0
    %v192 = vrcp.pop %v191
    %v193 = vmul.f32 1.0, %v192
    %v194 = vmul.f32 %v193, 2.0
    %v195 = vsub.f32 %v194, 1.0
    %v196 = vmul.f32 %v193, %v139
    %198 = vrot.lane.b32.xlu0 %v195, 96
    %v199 = vpop.permute.xlu0 %198
    %v201 = vmul.f32 %v193, %v199
    %203 = vrot.lane.b32.xlu0 %v201, 16
    %v204 = vpop.permute.xlu0 %203
    %v206 = vadd.f32 %v196, %v204
    %v207 = vtanh.pop %v206
    %209 = vrot.lane.b32.xlu0 %v207, 32
    %v210 = vpop.permute.xlu0 %209
    %v212 = vmul.f32 %v193, %v210
    %v213 = vlaneseq
    %v214 = vshrl.u32 %v213, 7
    %v215 = vsub.s32 0, %v214
    %v216 = vrot.slane %v212, %v215
    %v217 = vmul.f32 %v216, %v153
    %v218 = vmul.f32 %v216, %v155
    %221 = vrot.lane.b32.xlu0 %v217, 80
    %v222 = vpop.permute.xlu0 %221
    %223 = vrot.lane.b32.xlu0 %v218, 80
    %v224 = vpop.permute.xlu0 %223
    %v227 = vsel %vm168, %v222, 0.0
    %228 = vadd.xlane.f32.xlu0 %v227
    %v229 = vpop.xlane.xlu0 %228
    %v230 = vsel %vm168, %v224, 0.0
    %231 = vadd.xlane.f32.xlu0 %v230
    %v232 = vpop.xlane.xlu0 %231
    %v233 = vmul.f32 %v229, %v63
    %v234 = vmul.f32 %v232, %v64
    %v235 = vsel %vm81, %v233, 0.0
    %v236 = vsel %vm81, %v234, 0.0
    %v237 = vadd.f32 %v235, %v236
    %v238 = vrot.slane %v237, 4
    %v239 = vadd.f32 %v237, %v238
    %v240 = vrot.slane %v239, 2
    %v241 = vadd.f32 %v239, %v240
    %v242 = vrot.slane %v241, 1
    %v243 = vadd.f32 %v241, %v242
    %v244 = vadd.f32 %v92, %v243
    %v245 = vmul.f32 %v244, %v98
    %v246 = vxor.u32 %v245, 2147483648
    %v247 = vmul.f32 %v246, 1.442695
    %v248 = vpow.pop %v247
    %v249 = vadd.f32 %v248, 1.0
    %v250 = vrcp.pop %v249
    %v251 = vmul.f32 1.0, %v250
    %v252 = vmul.f32 %v251, 2.0
    %v253 = vsub.f32 %v252, 1.0
    %v254 = vmul.f32 %v251, %v206
    %256 = vrot.lane.b32.xlu0 %v253, 96
    %v257 = vpop.permute.xlu0 %256
    %v259 = vmul.f32 %v251, %v257
    %261 = vrot.lane.b32.xlu0 %v259, 16
    %v262 = vpop.permute.xlu0 %261
    %v264 = vadd.f32 %v254, %v262
    %v265 = vtanh.pop %v264
    %267 = vrot.lane.b32.xlu0 %v265, 32
    %v268 = vpop.permute.xlu0 %267
    %v270 = vmul.f32 %v251, %v268
    %v271 = vlaneseq
    %v272 = vshrl.u32 %v271, 7
    %v273 = vsub.s32 0, %v272
    %v274 = vrot.slane %v270, %v273
    %v275 = vmul.f32 %v274, %v153
    %v276 = vmul.f32 %v274, %v155
    %279 = vrot.lane.b32.xlu0 %v275, 80
    %v280 = vpop.permute.xlu0 %279
    %281 = vrot.lane.b32.xlu0 %v276, 80
    %v282 = vpop.permute.xlu0 %281
    %v285 = vsel %vm168, %v280, 0.0
    %286 = vadd.xlane.f32.xlu0 %v285
    %v287 = vpop.xlane.xlu0 %286
    %v288 = vsel %vm168, %v282, 0.0
    %289 = vadd.xlane.f32.xlu0 %v288
    %v290 = vpop.xlane.xlu0 %289
    %v291 = vmul.f32 %v287, %v63
    %v292 = vmul.f32 %v290, %v64
    %v293 = vsel %vm81, %v291, 0.0
    %v294 = vsel %vm81, %v292, 0.0
    %v295 = vadd.f32 %v293, %v294
    %v296 = vrot.slane %v295, 4
    %v297 = vadd.f32 %v295, %v296
    %v298 = vrot.slane %v297, 2
    %v299 = vadd.f32 %v297, %v298
    %v300 = vrot.slane %v299, 1
    %v301 = vadd.f32 %v299, %v300
    %v302 = vadd.f32 %v92, %v301
    %v303 = vmul.f32 %v302, %v98
    %v304 = vxor.u32 %v303, 2147483648
    %v305 = vmul.f32 %v304, 1.442695
    %v306 = vpow.pop %v305
    %v307 = vadd.f32 %v306, 1.0
    %v308 = vrcp.pop %v307
    %v309 = vmul.f32 1.0, %v308
    %v310 = vmul.f32 %v309, 2.0
    %v311 = vsub.f32 %v310, 1.0
    %v312 = vmul.f32 %v309, %v264
    %314 = vrot.lane.b32.xlu0 %v311, 96
    %v315 = vpop.permute.xlu0 %314
    %v317 = vmul.f32 %v309, %v315
    %319 = vrot.lane.b32.xlu0 %v317, 16
    %v320 = vpop.permute.xlu0 %319
    %v322 = vadd.f32 %v312, %v320
    %v323 = vtanh.pop %v322
    %325 = vrot.lane.b32.xlu0 %v323, 32
    %v326 = vpop.permute.xlu0 %325
    %v328 = vmul.f32 %v309, %v326
    %v329 = vlaneseq
    %v330 = vshrl.u32 %v329, 7
    %v331 = vsub.s32 0, %v330
    %v332 = vrot.slane %v328, %v331
    %v333 = vmul.f32 %v332, %v153
    %v334 = vmul.f32 %v332, %v155
    %337 = vrot.lane.b32.xlu0 %v333, 80
    %v338 = vpop.permute.xlu0 %337
    %339 = vrot.lane.b32.xlu0 %v334, 80
    %v340 = vpop.permute.xlu0 %339
    %v343 = vsel %vm168, %v338, 0.0
    %344 = vadd.xlane.f32.xlu0 %v343
    %v345 = vpop.xlane.xlu0 %344
    %v346 = vsel %vm168, %v340, 0.0
    %347 = vadd.xlane.f32.xlu0 %v346
    %v348 = vpop.xlane.xlu0 %347
    %v349 = vmul.f32 %v345, %v63
    %v350 = vmul.f32 %v348, %v64
    %v351 = vsel %vm81, %v349, 0.0
    %v352 = vsel %vm81, %v350, 0.0
    %v353 = vadd.f32 %v351, %v352
    %v354 = vrot.slane %v353, 4
    %v355 = vadd.f32 %v353, %v354
    %v356 = vrot.slane %v355, 2
    %v357 = vadd.f32 %v355, %v356
    %v358 = vrot.slane %v357, 1
    %v359 = vadd.f32 %v357, %v358
    %v360 = vadd.f32 %v92, %v359
    %v361 = vmul.f32 %v360, %v98
    %v362 = vxor.u32 %v361, 2147483648
    %v363 = vmul.f32 %v362, 1.442695
    %v364 = vpow.pop %v363
    %v365 = vadd.f32 %v364, 1.0
    %v366 = vrcp.pop %v365
    %v367 = vmul.f32 1.0, %v366
    %v368 = vmul.f32 %v367, 2.0
    %v369 = vsub.f32 %v368, 1.0
    %v370 = vmul.f32 %v367, %v322
    %372 = vrot.lane.b32.xlu0 %v369, 96
    %v373 = vpop.permute.xlu0 %372
    %v375 = vmul.f32 %v367, %v373
    %377 = vrot.lane.b32.xlu0 %v375, 16
    %v378 = vpop.permute.xlu0 %377
    %v380 = vadd.f32 %v370, %v378
    %v381 = vtanh.pop %v380
    %383 = vrot.lane.b32.xlu0 %v381, 32
    %v384 = vpop.permute.xlu0 %383
    %v386 = vmul.f32 %v367, %v384
    %v387 = vlaneseq
    %v388 = vshrl.u32 %v387, 7
    %v389 = vsub.s32 0, %v388
    %v390 = vrot.slane %v386, %v389
    %v391 = vmul.f32 %v390, %v153
    %v392 = vmul.f32 %v390, %v155
    %395 = vrot.lane.b32.xlu0 %v391, 80
    %v396 = vpop.permute.xlu0 %395
    %397 = vrot.lane.b32.xlu0 %v392, 80
    %v398 = vpop.permute.xlu0 %397
    %v401 = vsel %vm168, %v396, 0.0
    %402 = vadd.xlane.f32.xlu0 %v401
    %v403 = vpop.xlane.xlu0 %402
    %v404 = vsel %vm168, %v398, 0.0
    %405 = vadd.xlane.f32.xlu0 %v404
    %v406 = vpop.xlane.xlu0 %405
    %v407 = vmul.f32 %v403, %v63
    %v408 = vmul.f32 %v406, %v64
    %v409 = vsel %vm81, %v407, 0.0
    %v410 = vsel %vm81, %v408, 0.0
    %v411 = vadd.f32 %v409, %v410
    %v412 = vrot.slane %v411, 4
    %v413 = vadd.f32 %v411, %v412
    %v414 = vrot.slane %v413, 2
    %v415 = vadd.f32 %v413, %v414
    %v416 = vrot.slane %v415, 1
    %v417 = vadd.f32 %v415, %v416
    %v418 = vadd.f32 %v92, %v417
    %v419 = vmul.f32 %v418, %v98
    %v420 = vxor.u32 %v419, 2147483648
    %v421 = vmul.f32 %v420, 1.442695
    %v422 = vpow.pop %v421
    %v423 = vadd.f32 %v422, 1.0
    %v424 = vrcp.pop %v423
    %v425 = vmul.f32 1.0, %v424
    %v426 = vmul.f32 %v425, 2.0
    %v427 = vsub.f32 %v426, 1.0
    %v428 = vmul.f32 %v425, %v380
    %430 = vrot.lane.b32.xlu0 %v427, 96
    %v431 = vpop.permute.xlu0 %430
    %v433 = vmul.f32 %v425, %v431
    %435 = vrot.lane.b32.xlu0 %v433, 16
    %v436 = vpop.permute.xlu0 %435
    %v438 = vadd.f32 %v428, %v436
    %v439 = vtanh.pop %v438
    %441 = vrot.lane.b32.xlu0 %v439, 32
    %v442 = vpop.permute.xlu0 %441
    %v444 = vmul.f32 %v425, %v442
    %v445 = vlaneseq
    %v446 = vshrl.u32 %v445, 7
    %v447 = vsub.s32 0, %v446
    %v448 = vrot.slane %v444, %v447
    %v449 = vmul.f32 %v448, %v153
    %v450 = vmul.f32 %v448, %v155
    %453 = vrot.lane.b32.xlu0 %v449, 80
    %v454 = vpop.permute.xlu0 %453
    %455 = vrot.lane.b32.xlu0 %v450, 80
    %v456 = vpop.permute.xlu0 %455
    %v459 = vsel %vm168, %v454, 0.0
    %460 = vadd.xlane.f32.xlu0 %v459
    %v461 = vpop.xlane.xlu0 %460
    %v462 = vsel %vm168, %v456, 0.0
    %463 = vadd.xlane.f32.xlu0 %v462
    %v464 = vpop.xlane.xlu0 %463
    %v465 = vmul.f32 %v461, %v63
    %v466 = vmul.f32 %v464, %v64
    %v467 = vsel %vm81, %v465, 0.0
    %v468 = vsel %vm81, %v466, 0.0
    %v469 = vadd.f32 %v467, %v468
    %v470 = vrot.slane %v469, 4
    %v471 = vadd.f32 %v469, %v470
    %v472 = vrot.slane %v471, 2
    %v473 = vadd.f32 %v471, %v472
    %v474 = vrot.slane %v473, 1
    %v475 = vadd.f32 %v473, %v474
    %v476 = vadd.f32 %v92, %v475
    %v477 = vmul.f32 %v476, %v98
    %v478 = vxor.u32 %v477, 2147483648
    %v479 = vmul.f32 %v478, 1.442695
    %v480 = vpow.pop %v479
    %v481 = vadd.f32 %v480, 1.0
    %v482 = vrcp.pop %v481
    %v483 = vmul.f32 1.0, %v482
    %v484 = vmul.f32 %v483, 2.0
    %v485 = vsub.f32 %v484, 1.0
    %v486 = vmul.f32 %v483, %v438
    %488 = vrot.lane.b32.xlu0 %v485, 96
    %v489 = vpop.permute.xlu0 %488
    %v491 = vmul.f32 %v483, %v489
    %493 = vrot.lane.b32.xlu0 %v491, 16
    %v494 = vpop.permute.xlu0 %493
    %v496 = vadd.f32 %v486, %v494
    %v497 = vtanh.pop %v496
    %499 = vrot.lane.b32.xlu0 %v497, 32
    %v500 = vpop.permute.xlu0 %499
    %v502 = vmul.f32 %v483, %v500
    %v503 = vlaneseq
    %v504 = vshrl.u32 %v503, 7
    %v505 = vsub.s32 0, %v504
    %v506 = vrot.slane %v502, %v505
    %v507 = vmul.f32 %v506, %v153
    %v508 = vmul.f32 %v506, %v155
    %511 = vrot.lane.b32.xlu0 %v507, 80
    %v512 = vpop.permute.xlu0 %511
    %513 = vrot.lane.b32.xlu0 %v508, 80
    %v514 = vpop.permute.xlu0 %513
    %v517 = vsel %vm168, %v512, 0.0
    %518 = vadd.xlane.f32.xlu0 %v517
    %v519 = vpop.xlane.xlu0 %518
    %v520 = vsel %vm168, %v514, 0.0
    %521 = vadd.xlane.f32.xlu0 %v520
    %v522 = vpop.xlane.xlu0 %521
    %v523 = vmul.f32 %v519, %v63
    %v524 = vmul.f32 %v522, %v64
    %v525 = vsel %vm81, %v523, 0.0
    %v526 = vsel %vm81, %v524, 0.0
    %v527 = vadd.f32 %v525, %v526
    %v528 = vrot.slane %v527, 4
    %v529 = vadd.f32 %v527, %v528
    %v530 = vrot.slane %v529, 2
    %v531 = vadd.f32 %v529, %v530
    %v532 = vrot.slane %v531, 1
    %v533 = vadd.f32 %v531, %v532
    %v534 = vadd.f32 %v92, %v533
    %v535 = vmul.f32 %v534, %v98
    %v536 = vxor.u32 %v535, 2147483648
    %v537 = vmul.f32 %v536, 1.442695
    %v538 = vpow.pop %v537
    %v539 = vadd.f32 %v538, 1.0
    %v540 = vrcp.pop %v539
    %v541 = vmul.f32 1.0, %v540
    %v542 = vmul.f32 %v541, 2.0
    %v543 = vsub.f32 %v542, 1.0
    %v544 = vmul.f32 %v541, %v496
    %546 = vrot.lane.b32.xlu0 %v543, 96
    %v547 = vpop.permute.xlu0 %546
    %v549 = vmul.f32 %v541, %v547
    %551 = vrot.lane.b32.xlu0 %v549, 16
    %v552 = vpop.permute.xlu0 %551
    %v554 = vadd.f32 %v544, %v552
    %v555 = vtanh.pop %v554
    %557 = vrot.lane.b32.xlu0 %v555, 32
    %v558 = vpop.permute.xlu0 %557
    %v560 = vmul.f32 %v541, %v558
    %v562 = vrot.slane %v212, 7
    %v565 = vrot.slane %v270, 6
    %v568 = vrot.slane %v328, 5
    %v571 = vrot.slane %v386, 4
    %v574 = vrot.slane %v444, 3
    %v577 = vrot.slane %v502, 2
    %v580 = vrot.slane %v560, 1
    %vm582 = vcmask 1040384
    %v583 = vsel %vm582, %v145, %v562
    %vm584 = vcmask 1041408
    %v585 = vsel %vm584, %v583, %v565
    %vm586 = vcmask 1042432
    %v587 = vsel %vm586, %v585, %v568
    %vm588 = vcmask 1043456
    %v589 = vsel %vm588, %v587, %v571
    %vm590 = vcmask 1044480
    %v591 = vsel %vm590, %v589, %v574
    %vm592 = vcmask 1045504
    %v593 = vsel %vm592, %v591, %v577
    %vm594 = vcmask 1046528
    %v595 = vsel %vm594, %v593, %v580
    %vm596 = vcmask 523648
    %v597 = vsel %vm596, %v595, -inf
    %598 = vmax.xlane.f32.xlu0 %v597
    %v599 = vpop.xlane.xlu0 %598
    %v600 = vsub.f32 %v595, %v599
    %v601 = vmul.f32 %v600, 1.442695
    %v602 = vpow.pop %v601
    %604 = vrot.lane.b32.xlu0 %v602, 80
    %v605 = vpop.permute.xlu0 %604
    %v607 = vsel %vm168, %v605, 0.0
    %608 = vadd.xlane.f32.xlu0 %v607
    %v609 = vpop.xlane.xlu0 %608
    %v610 = vrcp.pop %v609
    %v611 = vmul.f32 %v602, %v610
    %v612 = vlog2.pop %v609
    %v613 = vmul.f32 %v612, 0.6931472
    %v614 = vsub.f32 %v600, %v613
    %v615 = vmul.f32 %v611, %v614
    %617 = vrot.lane.b32.xlu0 %v615, 80
    %v618 = vpop.permute.xlu0 %617
    %v620 = vsel %vm168, %v618, 0.0
    %621 = vadd.xlane.f32.xlu0 %v620
    %v622 = vpop.xlane.xlu0 %621
    %v623 = vrot.slane %v622, 4
    %v624 = vadd.f32 %v622, %v623
    %v625 = vrot.slane %v624, 2
    %v626 = vadd.f32 %v624, %v625
    %v627 = vrot.slane %v626, 1
    %v628 = vadd.f32 %v626, %v627
    %s629 = vtos %v628
    %s630 = ssub.f32 0.0, %s629
    %s631 = sld [smem:[#allocation7]]
    %s632 = sld [smem:[#allocation6]]
    %vm633 = vcmp.eq.s32.totalorder %v100, 0
    %v634 = vstv %s632
    %vm635 = vcmp.eq.s32.totalorder %v94, %v634
    %vm636 = vmand %vm633, %vm635
    %v637 = vstv %s631
    %v638 = vsel %vm636, %v637, 0.0
    %v639 = vadd.f32 %v638, 0.0
    %s640 = sld [smem:[#allocation6 + $0x1]]
    %vm641 = vcmp.eq.s32.totalorder %v100, 1
    %v642 = vstv %s640
    %vm643 = vcmp.eq.s32.totalorder %v94, %v642
    %vm644 = vmand %vm641, %vm643
    %v645 = vsel %vm644, %v637, 0.0
    %v646 = vadd.f32 %v639, %v645
    %s647 = sld [smem:[#allocation6 + $0x2]]
    %vm648 = vcmp.eq.s32.totalorder %v100, 2
    %v649 = vstv %s647
    %vm650 = vcmp.eq.s32.totalorder %v94, %v649
    %vm651 = vmand %vm648, %vm650
    %v652 = vsel %vm651, %v637, 0.0
    %v653 = vadd.f32 %v646, %v652
    %s654 = sld [smem:[#allocation6 + $0x3]]
    %vm655 = vcmp.eq.s32.totalorder %v100, 3
    %v656 = vstv %s654
    %vm657 = vcmp.eq.s32.totalorder %v94, %v656
    %vm658 = vmand %vm655, %vm657
    %v659 = vsel %vm658, %v637, 0.0
    %v660 = vadd.f32 %v653, %v659
    %s661 = sld [smem:[#allocation6 + $0x4]]
    %vm662 = vcmp.eq.s32.totalorder %v100, 4
    %v663 = vstv %s661
    %vm664 = vcmp.eq.s32.totalorder %v94, %v663
    %vm665 = vmand %vm662, %vm664
    %v666 = vsel %vm665, %v637, 0.0
    %v667 = vadd.f32 %v660, %v666
    %s668 = sld [smem:[#allocation6 + $0x5]]
    %vm669 = vcmp.eq.s32.totalorder %v100, 5
    %v670 = vstv %s668
    %vm671 = vcmp.eq.s32.totalorder %v94, %v670
    %vm672 = vmand %vm669, %vm671
    %v673 = vsel %vm672, %v637, 0.0
    %v674 = vadd.f32 %v667, %v673
    %s675 = sld [smem:[#allocation6 + $0x6]]
    %vm676 = vcmp.eq.s32.totalorder %v100, 6
    %v677 = vstv %s675
    %vm678 = vcmp.eq.s32.totalorder %v94, %v677
    %vm679 = vmand %vm676, %vm678
    %v680 = vsel %vm679, %v637, 0.0
    %v681 = vadd.f32 %v674, %v680
    %s682 = sld [smem:[#allocation6 + $0x7]]
    %vm683 = vcmp.eq.s32.totalorder %v100, 7
    %v684 = vstv %s682
    %vm685 = vcmp.eq.s32.totalorder %v94, %v684
    %vm686 = vmand %vm683, %vm685
    %v687 = vsel %vm686, %v637, 0.0
    %v688 = vadd.f32 %v681, %v687
    %s689 = sld [smem:[#allocation7 + $0x1]]
    %s690 = sld [smem:[#allocation6 + $0x8]]
    %v691 = vstv %s690
    %vm692 = vcmp.eq.s32.totalorder %v94, %v691
    %vm693 = vmand %vm633, %vm692
    %v694 = vstv %s689
    %v695 = vsel %vm693, %v694, 0.0
    %v696 = vadd.f32 %v688, %v695
    %s697 = sld [smem:[#allocation6 + $0x9]]
    %v698 = vstv %s697
    %vm699 = vcmp.eq.s32.totalorder %v94, %v698
    %vm700 = vmand %vm641, %vm699
    %v701 = vsel %vm700, %v694, 0.0
    %v702 = vadd.f32 %v696, %v701
    %s703 = sld [smem:[#allocation6 + $0xa]]
    %v704 = vstv %s703
    %vm705 = vcmp.eq.s32.totalorder %v94, %v704
    %vm706 = vmand %vm648, %vm705
    %v707 = vsel %vm706, %v694, 0.0
    %v708 = vadd.f32 %v702, %v707
    %s709 = sld [smem:[#allocation6 + $0xb]]
    %v710 = vstv %s709
    %vm711 = vcmp.eq.s32.totalorder %v94, %v710
    %vm712 = vmand %vm655, %vm711
    %v713 = vsel %vm712, %v694, 0.0
    %v714 = vadd.f32 %v708, %v713
    %s715 = sld [smem:[#allocation6 + $0xc]]
    %v716 = vstv %s715
    %vm717 = vcmp.eq.s32.totalorder %v94, %v716
    %vm718 = vmand %vm662, %vm717
    %v719 = vsel %vm718, %v694, 0.0
    %v720 = vadd.f32 %v714, %v719
    %s721 = sld [smem:[#allocation6 + $0xd]]
    %v722 = vstv %s721
    %vm723 = vcmp.eq.s32.totalorder %v94, %v722
    %vm724 = vmand %vm669, %vm723
    %v725 = vsel %vm724, %v694, 0.0
    %v726 = vadd.f32 %v720, %v725
    %s727 = sld [smem:[#allocation6 + $0xe]]
    %v728 = vstv %s727
    %vm729 = vcmp.eq.s32.totalorder %v94, %v728
    %vm730 = vmand %vm676, %vm729
    %v731 = vsel %vm730, %v694, 0.0
    %v732 = vadd.f32 %v726, %v731
    %s733 = sld [smem:[#allocation6 + $0xf]]
    %v734 = vstv %s733
    %vm735 = vcmp.eq.s32.totalorder %v94, %v734
    %vm736 = vmand %vm683, %vm735
    %v737 = vsel %vm736, %v694, 0.0
    %v738 = vadd.f32 %v732, %v737
    %740 = vrot.lane.b32.xlu0 %v738, 48
    %v741 = vpop.permute.xlu0 %740
    %v743 = vmul.f32 %v614, %v741
    %745 = vrot.lane.b32.xlu0 %v743, 80
    %v746 = vpop.permute.xlu0 %745
    %v748 = vsel %vm168, %v746, 0.0
    %749 = vadd.xlane.f32.xlu0 %v748
    %v750 = vpop.xlane.xlu0 %749
    %v751 = vrot.slane %v750, 4
    %v752 = vadd.f32 %v750, %v751
    %v753 = vrot.slane %v752, 2
    %v754 = vadd.f32 %v752, %v753
    %v755 = vrot.slane %v754, 1
    %v756 = vadd.f32 %v754, %v755
    %s757 = vtos %v756
    %s758 = ssub.f32 0.0, %s757
    %s759 = smul.f32 %s630, 2.0
    %s760 = sadd.f32 %s758, %s759
    %v761 = vrcp.pop 2.0
    %s762 = vtos %v761
    %s763 = smul.f32 %s760, %s762
    %s764 = scalar_lea.smem [#allocation9], 0
    %765 = sst [smem:[%s764]] %s763
    // Predicated region
    $region38: #{tpu_custom_call.1} parent=1 // pred_check
      _
    $region39: #{tpu_custom_call.1} parent=1 // pred_check_branch
      %767 = sbr.rel (0) target = $region41
    $region40: #{tpu_custom_call.1} parent=1 // pred_region
      %s769 = ssub.s32 16, 16
      %770 = vsyncadd [#allocation4], %s769
      %773 = dma.smem_to_hbm [#allocation9], 16, %s6, [#allocation4]
    $region41: #{tpu_custom_call.1} parent=1 // pred_fallthru
      _
    // Predicated region
    $region42: #{tpu_custom_call.1} parent=1 // pred_check
      _
    $region43: #{tpu_custom_call.1} parent=1 // pred_check_branch
      %775 = sbr.rel (0) target = $region45
    $region44: #{tpu_custom_call.1} parent=1 // pred_region
      %776 = dma.done [#allocation4], 16
    $region45: #{tpu_custom_call.1} parent=1 // pred_fallthru
      _
    %777 = sfence
    %778 = vsyncpa [#allocation3], 1
    %779 = vsyncpa [#allocation4], 1
    %780 = vsyncpa [#allocation5], 1
    %781 = vsyncpa [#allocation8], 1

</llo_original>
